<compile_context>
chip_gen: v6e
topology: v6e:2x2x1
jax: 0.10.0
libtpu: 0.0.40
codegen_flags: <defaults>
</compile_context>

<pallas_src>
import functools
import math

import jax
import jax.numpy as jnp
from jax.experimental import pallas as pl
from jax.experimental.pallas import tpu as pltpu


def _vmem_capacity_bytes():
    try:
        info = pltpu.get_tpu_info()
        cap = getattr(info, "vmem_capacity_bytes", None)
        if cap:
            return int(cap)
    except Exception:
        pass
    return 128 * 1024 * 1024


_VMEM_CAP = _vmem_capacity_bytes()
if _VMEM_CAP <= 80 * 1024 * 1024:            # v7x: 64 MiB VMEM per core
    _VMEM_LIMIT = 44 * 1024 * 1024
    _BLOCK_BUDGET = 5 * 1024 * 1024
else:                                         # v5e / v6e: 128 MiB VMEM
    _VMEM_LIMIT = 64 * 1024 * 1024
    _BLOCK_BUDGET = 10 * 1024 * 1024
# pass-1 blocks are smaller: kernel materializes f32 temporaries of the block.
_STATS_BLOCK_BUDGET = min(4 * 1024 * 1024, _BLOCK_BUDGET // 2)
# budget for the elementwise (A, HW) f32 accumulators (2 of them) in pass 1.
_ACC_BUDGET = 4 * 1024 * 1024


def _round_up(x, m):
    return ((x + m - 1) // m) * m


# ------------------------------ pass 1: batch statistics ------------------------------

def _stats_kernel(x_ref, shift_ref, sum_ref, sq_ref, *, rows, bt, blk_a, steps,
                  defer_lanes):
    """x_ref: (bt, HW) row tile.  shift_ref: (blk_a, 1) per-channel shift.
    sum_ref / sq_ref: (blk_a, aw) accumulators (reduction over grid axis 1)."""
    core = pl.program_id(0)
    step = pl.program_id(1)

    @pl.when(step == 0)
    def _():
        sum_ref[...] = jnp.zeros_like(sum_ref)
        sq_ref[...] = jnp.zeros_like(sq_ref)

    row0 = (core * steps + step) * bt          # un-clamped global row offset of this tile
    hw = x_ref.shape[-1]
    g = bt // blk_a
    x = x_ref[...].astype(jnp.float32).reshape(g, blk_a, hw)
    d = x - shift_ref[...][None, :, :]         # centered values (numerical stability)

    # mask rows that fall past the real row count (ragged / overshoot blocks)
    rid = (jax.lax.broadcasted_iota(jnp.int32, (g, blk_a, 1), 0) * blk_a
           + jax.lax.broadcasted_iota(jnp.int32, (g, blk_a, 1), 1) + row0)
    d = jnp.where(rid < rows, d, 0.0)

    ps = jnp.sum(d, axis=0)                    # (blk_a, HW): pure VPU adds
    pq = jnp.sum(d * d, axis=0)
    if not defer_lanes:                        # fall back to per-step lane reduce (big HW)
        ps = jnp.sum(ps, axis=-1, keepdims=True)
        pq = jnp.sum(pq, axis=-1, keepdims=True)
    sum_ref[...] += ps
    sq_ref[...] += pq


# ------------------- pass 2: fused normalize + affine + temporal scale ----------------

def _apply_kernel(x_ref, s_ref, b_ref, o_ref):
    """x_ref/o_ref: (bt2, HW). s_ref/b_ref: (bt2, 1) folded per-row scale / bias."""
    x = x_ref[...].astype(jnp.float32)
    o_ref[...] = (x * s_ref[...] + b_ref[...]).astype(o_ref.dtype)


def tebn_forward(x, p, gamma, beta, eps=1e-5):
    """TEBN forward (training-mode batch statistics).

    x: (N, T, C, H, W); p: (T,) temporal scale; gamma/beta: (C,) BN affine params.
    Returns y with the same shape as x.
    """
    N, T, C, H, W = x.shape
    p = jnp.asarray(p).reshape(-1)
    HW = H * W
    R = N * T * C
    itemsize = jnp.dtype(x.dtype).itemsize

    xr = x.reshape(R, HW)                       # contiguous -> free metadata reshape

    # Accumulator height: multiple of 8 (sublane tile) and of C so that accumulator
    # row a always maps to channel a % C.
    blk_a = (C * 8) // math.gcd(C, 8)           # lcm(C, 8)

    # ------------- pass 1: per-channel (shifted) sum / sumsq -------------
    bt = max(blk_a, (_STATS_BLOCK_BUDGET // max(1, HW * itemsize)) // blk_a * blk_a)
    bt = min(bt, _round_up(R, blk_a))
    nblocks = pl.cdiv(R, bt)
    ncores = 2 if nblocks >= 4 else 1           # megacore split on v7x; harmless elsewhere
    steps = pl.cdiv(nblocks, ncores)

    defer_lanes = (2 * blk_a * HW * 4) <= _ACC_BUDGET
    aw = HW if defer_lanes else 1

    # Per-channel shift (mean of one sample/timestep) to avoid E[x^2]-mean^2 cancellation.
    shift_c = jnp.mean(x[0, 0].astype(jnp.float32), axis=(1, 2))       # (C,)
    shift_a = jnp.tile(shift_c, blk_a // C).reshape(blk_a, 1)

    stats_kernel = functools.partial(
        _stats_kernel, rows=R, bt=bt, blk_a=blk_a, steps=steps, defer_lanes=defer_lanes)

    acc_sum, acc_sq = pl.pallas_call(
        stats_kernel,
        out_shape=(jax.ShapeDtypeStruct((ncores, blk_a, aw), jnp.float32),
                   jax.ShapeDtypeStruct((ncores, blk_a, aw), jnp.float32)),
        grid_spec=pltpu.PrefetchScalarGridSpec(
            num_scalar_prefetch=0,
            grid=(ncores, steps),
            in_specs=[
                pl.BlockSpec((bt, HW),
                             lambda c, i: (jnp.minimum(c * steps + i, nblocks - 1), 0)),
                pl.BlockSpec((blk_a, 1), lambda c, i: (0, 0)),
            ],
            out_specs=[
                pl.BlockSpec((None, blk_a, aw), lambda c, i: (c, 0, 0)),
                pl.BlockSpec((None, blk_a, aw), lambda c, i: (c, 0, 0)),
            ],
        ),
        compiler_params=pltpu.CompilerParams(
            dimension_semantics=("parallel", "arbitrary"),
            vmem_limit_bytes=_VMEM_LIMIT,
        ),
        cost_estimate=pl.CostEstimate(
            flops=4 * R * HW, transcendentals=0, bytes_accessed=R * HW * itemsize),
    )(xr, shift_a)

    # Tiny final combine in JAX: cores -> accumulator rows -> lanes -> per channel.
    s1 = acc_sum.sum(axis=0).reshape(blk_a // C, C, aw).sum(axis=(0, 2))   # (C,)
    s2 = acc_sq.sum(axis=0).reshape(blk_a // C, C, aw).sum(axis=(0, 2))
    count = float(N * T * HW)
    dmean = s1 / count
    mean = shift_c + dmean
    var = jnp.maximum(s2 / count - dmean * dmean, 0.0)    # biased variance (training BN)
    inv_std = jax.lax.rsqrt(var + eps)

    # Fold BN normalization + affine + temporal scale into per-row scale / bias columns.
    g = gamma.astype(jnp.float32) * inv_std                               # (C,)
    scale_tc = p.astype(jnp.float32)[:, None] * g[None, :]                # (T, C)
    bias_tc = p.astype(jnp.float32)[:, None] * (
        beta.astype(jnp.float32)[None, :] - mean[None, :] * g[None, :])   # (T, C)
    scale_r = jnp.broadcast_to(scale_tc[None], (N, T, C)).reshape(R, 1)
    bias_r = jnp.broadcast_to(bias_tc[None], (N, T, C)).reshape(R, 1)

    # ------------- pass 2: fused elementwise y = x * s[row] + b[row] -------------
    bt2 = max(8, _BLOCK_BUDGET // max(1, HW * itemsize))
    bt2 = min(bt2, _round_up(R, 8))
    if R > 8:
        # keep the grid length >= 2 so v7x can megacore-shard the dominant pass
        bt2 = min(bt2, _round_up(pl.cdiv(R, 2), 8))
    bt2 = max(8, (bt2 // 8) * 8)
    grid2 = pl.cdiv(R, bt2)

    yr = pl.pallas_call(
        _apply_kernel,
        out_shape=jax.ShapeDtypeStruct((R, HW), x.dtype),
        grid_spec=pltpu.PrefetchScalarGridSpec(
            num_scalar_prefetch=0,
            grid=(grid2,),
            in_specs=[
                pl.BlockSpec((bt2, HW), lambda i: (i, 0)),
                pl.BlockSpec((bt2, 1), lambda i: (i, 0)),
                pl.BlockSpec((bt2, 1), lambda i: (i, 0)),
            ],
            out_specs=pl.BlockSpec((bt2, HW), lambda i: (i, 0)),
        ),
        compiler_params=pltpu.CompilerParams(
            dimension_semantics=("parallel",),
            vmem_limit_bytes=_VMEM_LIMIT,
        ),
        cost_estimate=pl.CostEstimate(
            flops=2 * R * HW, transcendentals=0, bytes_accessed=2 * R * HW * itemsize),
    )(xr, scale_r, bias_r)

    return yr.reshape(N, T, C, H, W)


def _tebn_reference(x, p, gamma, beta, eps=1e-5):
    """Pure-JAX reference mirroring the PyTorch TEBN forward (training mode)."""
    N, T, C, H, W = x.shape
    xf = x.reshape(N * T, C, H * W).astype(jnp.float32)
    mean = jnp.mean(xf, axis=(0, 2))
    var = jnp.var(xf, axis=(0, 2))                   # biased, as used for normalization
    y = (xf - mean[None, :, None]) * jax.lax.rsqrt(var[None, :, None] + eps)
    y = y * gamma[None, :, None] + beta[None, :, None]
    y = y.reshape(N, T, C, H, W)
    return (y * p.reshape(-1)[None, :, None, None, None]).astype(x.dtype)


if __name__ == "__main__":
    key = jax.random.PRNGKey(0)
    k1, k2, k3, k4 = jax.random.split(key, 4)
    # The module hard-codes 10 timesteps (p has shape (10, 1, 1, 1, 1)).
    N, T, C, H, W = 2, 10, 4, 16, 16
    x = 1.5 * jax.random.normal(k1, (N, T, C, H, W), dtype=jnp.float32) + 0.7
    # Learnable params (init would be p=1, gamma=1, beta=0; perturbed to exercise the math).
    p = 1.0 + 0.1 * jax.random.normal(k2, (T,), dtype=jnp.float32)
    gamma = 1.0 + 0.1 * jax.random.normal(k3, (C,), dtype=jnp.float32)
    beta = 0.1 * jax.random.normal(k4, (C,), dtype=jnp.float32)

    y = tebn_forward(x, p, gamma, beta, eps=1e-5)
    y = jax.block_until_ready(y)

    y_ref = _tebn_reference(x, p, gamma, beta, eps=1e-5)
    assert y.shape == x.shape
    err = float(jnp.max(jnp.abs(y - y_ref)))
    assert jnp.allclose(y, y_ref, atol=2e-3, rtol=2e-3), err

    print("KERNEL_OK")
</pallas_src>

<mosaic_0001>
module attributes {stable_mosaic.version = 11 : i64} {
  func.func @_stats_kernel(%arg0: i32, %arg1: i32, %arg2: memref<80x256xf32, #tpu.memory_space<vmem>>, %arg3: memref<8x1xf32, #tpu.memory_space<vmem>>, %arg4: memref<1x8x256xf32, #tpu.memory_space<vmem>>, %arg5: memref<1x8x256xf32, #tpu.memory_space<vmem>>) attributes {dimension_semantics = [#tpu.dimension_semantics<parallel>, #tpu.dimension_semantics<arbitrary>], iteration_bounds = array<i64: 1, 1>, scalar_prefetch = 0 : i64, scratch_operands = 0 : i64, tpu.core_type = #tpu.core_type<tc>, window_params = [{transform_indices = @transform_0, window_bounds = array<i64: 80, 256>}, {pipeline_mode = #tpu.pipeline_mode<synchronous>, transform_indices = @transform_1, window_bounds = array<i64: 8, 1>}, {transform_indices = @transform_2, window_bounds = array<i64: 1, 8, 256>}, {transform_indices = @transform_3, window_bounds = array<i64: 1, 8, 256>}]} {
    %c0_i32 = arith.constant 0 : i32
    %0 = arith.cmpi eq, %arg1, %c0_i32 : i32
    %1 = arith.extui %0 : i1 to i32
    %c0_i32_0 = arith.constant 0 : i32
    %2 = arith.cmpi ne, %1, %c0_i32_0 : i32
    scf.if %2 {
      %cst_19 = arith.constant 0.000000e+00 : f32
      %40 = vector.broadcast %cst_19 : f32 to vector<8x256xf32>
      %c0_20 = arith.constant 0 : index
      %c0_21 = arith.constant 0 : index
      %c0_22 = arith.constant 0 : index
      %41 = vector.load %arg4[%c0_20, %c0_21, %c0_22] : memref<1x8x256xf32, #tpu.memory_space<vmem>>, vector<1x8x256xf32>
      %42 = vector.shape_cast %41 : vector<1x8x256xf32> to vector<8x256xf32>
      %43 = vector.shape_cast %40 : vector<8x256xf32> to vector<1x8x256xf32>
      tpu.vector_store %arg4[%c0_20, %c0_21, %c0_22], %43 {strides = array<i32>} : memref<1x8x256xf32, #tpu.memory_space<vmem>>, vector<1x8x256xf32>,
      %cst_23 = arith.constant 0.000000e+00 : f32
      %44 = vector.broadcast %cst_23 : f32 to vector<8x256xf32>
      %c0_24 = arith.constant 0 : index
      %c0_25 = arith.constant 0 : index
      %c0_26 = arith.constant 0 : index
      %45 = vector.load %arg5[%c0_24, %c0_25, %c0_26] : memref<1x8x256xf32, #tpu.memory_space<vmem>>, vector<1x8x256xf32>
      %46 = vector.shape_cast %45 : vector<1x8x256xf32> to vector<8x256xf32>
      %47 = vector.shape_cast %44 : vector<8x256xf32> to vector<1x8x256xf32>
      tpu.vector_store %arg5[%c0_24, %c0_25, %c0_26], %47 {strides = array<i32>} : memref<1x8x256xf32, #tpu.memory_space<vmem>>, vector<1x8x256xf32>,
    } else {
    }
    %c1_i32 = arith.constant 1 : i32
    %3 = arith.muli %arg0, %c1_i32 : i32
    %4 = arith.addi %3, %arg1 : i32
    %c80_i32 = arith.constant 80 : i32
    %5 = arith.muli %4, %c80_i32 : i32
    %c0 = arith.constant 0 : index
    %c0_1 = arith.constant 0 : index
    %6 = vector.load %arg2[%c0, %c0_1] : memref<80x256xf32, #tpu.memory_space<vmem>>, vector<80x256xf32>
    %7 = vector.shape_cast %6 : vector<80x256xf32> to vector<10x8x256xf32>
    %c0_2 = arith.constant 0 : index
    %c0_3 = arith.constant 0 : index
    %8 = vector.load %arg3[%c0_2, %c0_3] : memref<8x1xf32, #tpu.memory_space<vmem>>, vector<8x1xf32>
    %9 = vector.shape_cast %8 : vector<8x1xf32> to vector<1x8x1xf32>
    %10 = vector.broadcast %9 : vector<1x8x1xf32> to vector<10x8x256xf32>
    %11 = arith.subf %7, %10 : vector<10x8x256xf32>
    %12 = tpu.iota {dimensions = array<i32: 0>} : vector<10x8x1xi32>
    %c8_i32 = arith.constant 8 : i32
    %13 = vector.broadcast %c8_i32 : i32 to vector<10x8x1xi32>
    %14 = arith.muli %12, %13 : vector<10x8x1xi32>
    %15 = tpu.iota {dimensions = array<i32: 1>} : vector<10x8x1xi32>
    %16 = arith.addi %14, %15 : vector<10x8x1xi32>
    %17 = vector.broadcast %5 : i32 to vector<10x8x1xi32>
    %18 = arith.addi %16, %17 : vector<10x8x1xi32>
    %c80_i32_4 = arith.constant 80 : i32
    %19 = vector.broadcast %c80_i32_4 : i32 to vector<10x8x1xi32>
    %20 = arith.cmpi slt, %18, %19 : vector<10x8x1xi32>
    %cst = arith.constant 0.000000e+00 : f32
    %21 = vector.shape_cast %20 : vector<10x8x1xi1> to vector<10x8x1xi1>
    %22 = vector.broadcast %21 : vector<10x8x1xi1> to vector<10x8x256xi1>
    %23 = vector.broadcast %cst : f32 to vector<10x8x256xf32>
    %24 = arith.select %22, %11, %23 : vector<10x8x256xi1>, vector<10x8x256xf32>
    %cst_5 = arith.constant dense<0.000000e+00> : vector<8x256xf32>
    %25 = vector.multi_reduction <add>, %24, %cst_5 [0] : vector<10x8x256xf32> to vector<8x256xf32>
    %26 = arith.mulf %24, %24 : vector<10x8x256xf32>
    %cst_6 = arith.constant dense<0.000000e+00> : vector<8x256xf32>
    %27 = vector.multi_reduction <add>, %26, %cst_6 [0] : vector<10x8x256xf32> to vector<8x256xf32>
    %c0_7 = arith.constant 0 : index
    %c0_8 = arith.constant 0 : index
    %c0_9 = arith.constant 0 : index
    %28 = vector.load %arg4[%c0_7, %c0_8, %c0_9] : memref<1x8x256xf32, #tpu.memory_space<vmem>>, vector<1x8x256xf32>
    %29 = vector.shape_cast %28 : vector<1x8x256xf32> to vector<8x256xf32>
    %30 = arith.addf %29, %25 : vector<8x256xf32>
    %c0_10 = arith.constant 0 : index
    %c0_11 = arith.constant 0 : index
    %c0_12 = arith.constant 0 : index
    %31 = vector.load %arg4[%c0_10, %c0_11, %c0_12] : memref<1x8x256xf32, #tpu.memory_space<vmem>>, vector<1x8x256xf32>
    %32 = vector.shape_cast %31 : vector<1x8x256xf32> to vector<8x256xf32>
    %33 = vector.shape_cast %30 : vector<8x256xf32> to vector<1x8x256xf32>
    tpu.vector_store %arg4[%c0_10, %c0_11, %c0_12], %33 {strides = array<i32>} : memref<1x8x256xf32, #tpu.memory_space<vmem>>, vector<1x8x256xf32>,
    %c0_13 = arith.constant 0 : index
    %c0_14 = arith.constant 0 : index
    %c0_15 = arith.constant 0 : index
    %34 = vector.load %arg5[%c0_13, %c0_14, %c0_15] : memref<1x8x256xf32, #tpu.memory_space<vmem>>, vector<1x8x256xf32>
    %35 = vector.shape_cast %34 : vector<1x8x256xf32> to vector<8x256xf32>
    %36 = arith.addf %35, %27 : vector<8x256xf32>
    %c0_16 = arith.constant 0 : index
    %c0_17 = arith.constant 0 : index
    %c0_18 = arith.constant 0 : index
    %37 = vector.load %arg5[%c0_16, %c0_17, %c0_18] : memref<1x8x256xf32, #tpu.memory_space<vmem>>, vector<1x8x256xf32>
    %38 = vector.shape_cast %37 : vector<1x8x256xf32> to vector<8x256xf32>
    %39 = vector.shape_cast %36 : vector<8x256xf32> to vector<1x8x256xf32>
    tpu.vector_store %arg5[%c0_16, %c0_17, %c0_18], %39 {strides = array<i32>} : memref<1x8x256xf32, #tpu.memory_space<vmem>>, vector<1x8x256xf32>,
    return
  }
  func.func @transform_0(%arg0: i32, %arg1: i32) -> (i32, i32) {
    %c1_i32 = arith.constant 1 : i32
    %0 = arith.muli %arg0, %c1_i32 : i32
    %1 = arith.addi %0, %arg1 : i32
    %c0_i32 = arith.constant 0 : i32
    %2 = arith.minsi %1, %c0_i32 : i32
    %c0_i32_0 = arith.constant 0 : i32
    %c0_i32_1 = arith.constant 0 : i32
    return %2, %c0_i32_0 : i32, i32
  }
  func.func @transform_1(%arg0: i32, %arg1: i32) -> (i32, i32) {
    %c0_i32 = arith.constant 0 : i32
    %c0_i32_0 = arith.constant 0 : i32
    %c0_i32_1 = arith.constant 0 : i32
    return %c0_i32, %c0_i32_0 : i32, i32
  }
  func.func @transform_2(%arg0: i32, %arg1: i32) -> (i32, i32, i32) {
    %c0_i32 = arith.constant 0 : i32
    %c0_i32_0 = arith.constant 0 : i32
    %c0_i32_1 = arith.constant 0 : i32
    return %arg0, %c0_i32, %c0_i32_0 : i32, i32, i32
  }
  func.func @transform_3(%arg0: i32, %arg1: i32) -> (i32, i32, i32) {
    %c0_i32 = arith.constant 0 : i32
    %c0_i32_0 = arith.constant 0 : i32
    %c0_i32_1 = arith.constant 0 : i32
    return %arg0, %c0_i32, %c0_i32_0 : i32, i32, i32
  }
}

</mosaic_0001>

<llo_original>
// kernel: tpu_custom_call.1
$region0: #{tpu_custom_call.1}
  #allocation0 [shape = 'u32[]', space=smem, size = 0x4, offset = 0x4, fixed_abs, tag = 'smem constant byte address 0x4 - core index']
  #allocation1 [shape = 'u32[144,128]{1,0:T(1,128)}', space=vmem, size = 0x12000, scoped, tag = 'internal scratch']
  %s0 = inlined_call_operand.hbm [shape: f32[80,256], index: 0, kind: input, shape index: {}]
  %s1 = inlined_call_operand.vmem [shape: f32[8,1], index: 1, kind: input, shape index: {}]
  %s2 = inlined_call_operand.hbm [shape: f32[1,8,256], index: 2, kind: output, shape index: {0}]
  %s3 = inlined_call_operand.hbm [shape: f32[1,8,256], index: 3, kind: output, shape index: {1}]
  %4 = xla_tuple %s2, %s3
  %s5 = sld [smem:[#allocation0]]
  $region34: #{tpu_custom_call.1} parent=0
    _
  %s7 = ssub.s32 1, %s5
  %s8 = scalar_select 0, %s7, %s5
  $region1: #{tpu_custom_call.1} parent=0
    #allocation2 [shape = 'u8[81920]{0}', space=vmem, size = 0x14000, scoped, tag = 'input window, operand 0, single buffered']
    #allocation3 [shape = 's32[1]{0}', space=sflag, size = 0x4, scoped, tag = 'scoped memory for tpu_custom_call.1']
    #allocation4 [shape = 's32[1]{0}', space=sflag, size = 0x4, scoped, tag = 'scoped memory for tpu_custom_call.1']
    #allocation5 [shape = 'u8[8192]{0}', space=vmem, size = 0x2000, scoped, tag = 'output window, operand 0, single buffered']
    #allocation6 [shape = 'u8[8192]{0}', space=vmem, size = 0x2000, scoped, tag = 'output window, operand 1, single buffered']
    #allocation7 [shape = 's32[1]{0}', space=sflag, size = 0x4, scoped, tag = 'scoped memory for tpu_custom_call.1']
    %9 = vsyncpa [#allocation3], 0
    %10 = vsyncpa [#allocation4], 0
    %11 = vsyncpa [#allocation7], 0
    // Predicated region
    $region2: #{tpu_custom_call.1} parent=1 // pred_check
      _
    $region3: #{tpu_custom_call.1} parent=1 // pred_check_branch
      %13 = sbr.rel (0) target = $region5
    $region4: #{tpu_custom_call.1} parent=1 // pred_region
      %s14 = sadd.s32 0, 0
      %p15 = scmp.lt.s32.totalorder %s14, 0
      %s16 = scalar_select %p15, %s14, 0
      %s17 = smul.u32 10, %s16
      %s19 = ssub.s32 2560, 2560
      %20 = vsyncadd [#allocation3], %s19
      %s21 = smul.addr %s17, 2
      %s22 = smul.addr %s21, 128
      %s23 = scalar_lea.hbm %s0, %s22
      %s24 = sshll.u32 [#allocation2], 4
      %s25 = int_to_ptr.vmem [resolvable:$true] %s24
      %30 = dma.hbm_to_vmem [thread:$0]  %s23, 2560, %s25, [#allocation3], 256, 256, 16
    $region5: #{tpu_custom_call.1} parent=1 // pred_fallthru
      _
    // Predicated region
    $region6: #{tpu_custom_call.1} parent=1 // pred_check
      _
    $region7: #{tpu_custom_call.1} parent=1 // pred_check_branch
      %32 = sbr.rel (0) target = $region9
    $region8: #{tpu_custom_call.1} parent=1 // pred_region
      _
    $region9: #{tpu_custom_call.1} parent=1 // pred_fallthru
      _
    // Predicated region
    $region10: #{tpu_custom_call.1} parent=1 // pred_check
      _
    $region11: #{tpu_custom_call.1} parent=1 // pred_check_branch
      %34 = sbr.rel (0) target = $region13
    $region12: #{tpu_custom_call.1} parent=1 // pred_region
      %35 = dma.done [#allocation3], 2560
    $region13: #{tpu_custom_call.1} parent=1 // pred_fallthru
      _
    %s36 = sadd.s32 0, 0
    %p37 = scmp.lt.s32.totalorder %s36, 0
    %s38 = scalar_select %p37, %s36, 0
    %s39 = smul.u32 10, %s38
    %p40 = scmp.eq.s32.totalorder 0, 0
    // Predicated region
    $region14: #{tpu_custom_call.1} parent=1 // pred_check
      %p41 = pneg %p40
    $region15: #{tpu_custom_call.1} parent=1 // pred_check_branch
      %43 = sbr.rel (%p41) target = $region17
    $region16: #{tpu_custom_call.1} parent=1 // pred_region
      %44 = vst [vmem:[#allocation5] sm:$0xff] 0.0
      %45 = vst [vmem:[#allocation5 + $0x8] sm:$0xff] 0.0
      %46 = vst [vmem:[#allocation6] sm:$0xff] 0.0
      %47 = vst [vmem:[#allocation6 + $0x8] sm:$0xff] 0.0
    $region17: #{tpu_custom_call.1} parent=1 // pred_fallthru
      _
    %s48 = sadd.s32 0, 0
    %s49 = smul.u32 %s48, 80
    %v50 = vld [vmem:[#allocation2] sm:$0xff]
    %v51 = vld [vmem:[#allocation2 + $0x8] sm:$0xff]
    %v52 = vld [vmem:[#allocation2 + $0x10] sm:$0xff]
    %v53 = vld [vmem:[#allocation2 + $0x18] sm:$0xff]
    %v54 = vld [vmem:[#allocation2 + $0x20] sm:$0xff]
    %v55 = vld [vmem:[#allocation2 + $0x28] sm:$0xff]
    %v56 = vld [vmem:[#allocation2 + $0x30] sm:$0xff]
    %v57 = vld [vmem:[#allocation2 + $0x38] sm:$0xff]
    %v58 = vld [vmem:[#allocation2 + $0x40] sm:$0xff]
    %v59 = vld [vmem:[#allocation2 + $0x48] sm:$0xff]
    %v60 = vld [vmem:[#allocation2 + $0x50] sm:$0xff]
    %v61 = vld [vmem:[#allocation2 + $0x58] sm:$0xff]
    %v62 = vld [vmem:[#allocation2 + $0x60] sm:$0xff]
    %v63 = vld [vmem:[#allocation2 + $0x68] sm:$0xff]
    %v64 = vld [vmem:[#allocation2 + $0x70] sm:$0xff]
    %v65 = vld [vmem:[#allocation2 + $0x78] sm:$0xff]
    %v66 = vld [vmem:[#allocation2 + $0x80] sm:$0xff]
    %v67 = vld [vmem:[#allocation2 + $0x88] sm:$0xff]
    %v68 = vld [vmem:[#allocation2 + $0x90] sm:$0xff]
    %v69 = vld [vmem:[#allocation2 + $0x98] sm:$0xff]
    %v70 = vld [vmem:[%s1] sm:$0xff]
    %72 = vset.pattern.permute.xlu0 0
    %73 = vperm.xlu0 %72, %v70
    %v74 = vpop.permute.xlu0 %73
    %v76 = vsub.f32 %v50, %v74
    %v77 = vsub.f32 %v51, %v74
    %v78 = vsub.f32 %v52, %v74
    %v79 = vsub.f32 %v53, %v74
    %v80 = vsub.f32 %v54, %v74
    %v81 = vsub.f32 %v55, %v74
    %v82 = vsub.f32 %v56, %v74
    %v83 = vsub.f32 %v57, %v74
    %v84 = vsub.f32 %v58, %v74
    %v85 = vsub.f32 %v59, %v74
    %v86 = vsub.f32 %v60, %v74
    %v87 = vsub.f32 %v61, %v74
    %v88 = vsub.f32 %v62, %v74
    %v89 = vsub.f32 %v63, %v74
    %v90 = vsub.f32 %v64, %v74
    %v91 = vsub.f32 %v65, %v74
    %v92 = vsub.f32 %v66, %v74
    %v93 = vsub.f32 %v67, %v74
    %v94 = vsub.f32 %v68, %v74
    %v95 = vsub.f32 %v69, %v74
    %v96 = vlaneseq
    %v97 = vshrl.u32 %v96, 7
    %v98 = vadd.s32 %v97, 8
    %v99 = vadd.s32 %v97, 16
    %v100 = vadd.s32 %v97, 24
    %v101 = vadd.s32 %v97, 32
    %v102 = vadd.s32 %v97, 40
    %v103 = vadd.s32 %v97, 48
    %v104 = vadd.s32 %v97, 56
    %v105 = vadd.s32 %v97, 64
    %v106 = vadd.s32 %v97, 72
    %v107 = vstv %s49
    %v108 = vadd.s32 %v97, %v107
    %v109 = vadd.s32 %v98, %v107
    %v110 = vadd.s32 %v99, %v107
    %v111 = vadd.s32 %v100, %v107
    %v112 = vadd.s32 %v101, %v107
    %v113 = vadd.s32 %v102, %v107
    %v114 = vadd.s32 %v103, %v107
    %v115 = vadd.s32 %v104, %v107
    %v116 = vadd.s32 %v105, %v107
    %v117 = vadd.s32 %v106, %v107
    %vm118 = vcmp.lt.s32.totalorder %v108, 80
    %vm119 = vcmp.lt.s32.totalorder %v109, 80
    %vm120 = vcmp.lt.s32.totalorder %v110, 80
    %vm121 = vcmp.lt.s32.totalorder %v111, 80
    %vm122 = vcmp.lt.s32.totalorder %v112, 80
    %vm123 = vcmp.lt.s32.totalorder %v113, 80
    %vm124 = vcmp.lt.s32.totalorder %v114, 80
    %vm125 = vcmp.lt.s32.totalorder %v115, 80
    %vm126 = vcmp.lt.s32.totalorder %v116, 80
    %vm127 = vcmp.lt.s32.totalorder %v117, 80
    %v128 = vsel %vm118, 1, 0
    %v129 = vsel %vm119, 1, 0
    %v130 = vsel %vm120, 1, 0
    %v131 = vsel %vm121, 1, 0
    %v132 = vsel %vm122, 1, 0
    %v133 = vsel %vm123, 1, 0
    %v134 = vsel %vm124, 1, 0
    %v135 = vsel %vm125, 1, 0
    %v136 = vsel %vm126, 1, 0
    %v137 = vsel %vm127, 1, 0
    %vm138 = vcmp.eq.s32.totalorder %v128, 1
    %vm139 = vcmp.eq.s32.totalorder %v129, 1
    %vm140 = vcmp.eq.s32.totalorder %v130, 1
    %vm141 = vcmp.eq.s32.totalorder %v131, 1
    %vm142 = vcmp.eq.s32.totalorder %v132, 1
    %vm143 = vcmp.eq.s32.totalorder %v133, 1
    %vm144 = vcmp.eq.s32.totalorder %v134, 1
    %vm145 = vcmp.eq.s32.totalorder %v135, 1
    %vm146 = vcmp.eq.s32.totalorder %v136, 1
    %vm147 = vcmp.eq.s32.totalorder %v137, 1
    %v148 = vsel %vm138, %v76, 0.0
    %v149 = vsel %vm138, %v77, 0.0
    %v150 = vsel %vm139, %v78, 0.0
    %v151 = vsel %vm139, %v79, 0.0
    %v152 = vsel %vm140, %v80, 0.0
    %v153 = vsel %vm140, %v81, 0.0
    %v154 = vsel %vm141, %v82, 0.0
    %v155 = vsel %vm141, %v83, 0.0
    %v156 = vsel %vm142, %v84, 0.0
    %v157 = vsel %vm142, %v85, 0.0
    %v158 = vsel %vm143, %v86, 0.0
    %v159 = vsel %vm143, %v87, 0.0
    %v160 = vsel %vm144, %v88, 0.0
    %v161 = vsel %vm144, %v89, 0.0
    %v162 = vsel %vm145, %v90, 0.0
    %v163 = vsel %vm145, %v91, 0.0
    %v164 = vsel %vm146, %v92, 0.0
    %v165 = vsel %vm146, %v93, 0.0
    %v166 = vsel %vm147, %v94, 0.0
    %v167 = vsel %vm147, %v95, 0.0
    %v168 = vadd.f32 %v148, %v150
    %v169 = vadd.f32 %v168, %v152
    %v170 = vadd.f32 %v169, %v154
    %v171 = vadd.f32 %v170, %v156
    %v172 = vadd.f32 %v171, %v158
    %v173 = vadd.f32 %v172, %v160
    %v174 = vadd.f32 %v173, %v162
    %v175 = vadd.f32 %v174, %v164
    %v176 = vadd.f32 %v175, %v166
    %v177 = vadd.f32 %v149, %v151
    %v178 = vadd.f32 %v177, %v153
    %v179 = vadd.f32 %v178, %v155
    %v180 = vadd.f32 %v179, %v157
    %v181 = vadd.f32 %v180, %v159
    %v182 = vadd.f32 %v181, %v161
    %v183 = vadd.f32 %v182, %v163
    %v184 = vadd.f32 %v183, %v165
    %v185 = vadd.f32 %v184, %v167
    %v186 = vmul.f32 %v148, %v148
    %v187 = vmul.f32 %v149, %v149
    %v188 = vmul.f32 %v150, %v150
    %v189 = vmul.f32 %v151, %v151
    %v190 = vmul.f32 %v152, %v152
    %v191 = vmul.f32 %v153, %v153
    %v192 = vmul.f32 %v154, %v154
    %v193 = vmul.f32 %v155, %v155
    %v194 = vmul.f32 %v156, %v156
    %v195 = vmul.f32 %v157, %v157
    %v196 = vmul.f32 %v158, %v158
    %v197 = vmul.f32 %v159, %v159
    %v198 = vmul.f32 %v160, %v160
    %v199 = vmul.f32 %v161, %v161
    %v200 = vmul.f32 %v162, %v162
    %v201 = vmul.f32 %v163, %v163
    %v202 = vmul.f32 %v164, %v164
    %v203 = vmul.f32 %v165, %v165
    %v204 = vmul.f32 %v166, %v166
    %v205 = vmul.f32 %v167, %v167
    %v206 = vadd.f32 %v186, %v188
    %v207 = vadd.f32 %v206, %v190
    %v208 = vadd.f32 %v207, %v192
    %v209 = vadd.f32 %v208, %v194
    %v210 = vadd.f32 %v209, %v196
    %v211 = vadd.f32 %v210, %v198
    %v212 = vadd.f32 %v211, %v200
    %v213 = vadd.f32 %v212, %v202
    %v214 = vadd.f32 %v213, %v204
    %v215 = vadd.f32 %v187, %v189
    %v216 = vadd.f32 %v215, %v191
    %v217 = vadd.f32 %v216, %v193
    %v218 = vadd.f32 %v217, %v195
    %v219 = vadd.f32 %v218, %v197
    %v220 = vadd.f32 %v219, %v199
    %v221 = vadd.f32 %v220, %v201
    %v222 = vadd.f32 %v221, %v203
    %v223 = vadd.f32 %v222, %v205
    %v224 = vld [vmem:[#allocation5] sm:$0xff]
    %v225 = vld [vmem:[#allocation5 + $0x8] sm:$0xff]
    %v226 = vadd.f32 %v224, %v176
    %v227 = vadd.f32 %v225, %v185
    %228 = vst [vmem:[#allocation5] sm:$0xff] %v226
    %229 = vst [vmem:[#allocation5 + $0x8] sm:$0xff] %v227
    %v230 = vld [vmem:[#allocation6] sm:$0xff]
    %v231 = vld [vmem:[#allocation6 + $0x8] sm:$0xff]
    %v232 = vadd.f32 %v230, %v214
    %v233 = vadd.f32 %v231, %v223
    %234 = vst [vmem:[#allocation6] sm:$0xff] %v232
    %235 = vst [vmem:[#allocation6 + $0x8] sm:$0xff] %v233
    // Predicated region
    $region18: #{tpu_custom_call.1} parent=1 // pred_check
      _
    $region19: #{tpu_custom_call.1} parent=1 // pred_check_branch
      %237 = sbr.rel (0) target = $region21
    $region20: #{tpu_custom_call.1} parent=1 // pred_region
      %s239 = ssub.s32 256, 256
      %240 = vsyncadd [#allocation4], %s239
      %s242 = sshll.u32 [#allocation5], 4
      %s243 = int_to_ptr.vmem [resolvable:$true] %s242
      %245 = dma.vmem_to_hbm [thread:$0]  %s243, 256, %s2, [#allocation4]
    $region21: #{tpu_custom_call.1} parent=1 // pred_fallthru
      _
    // Predicated region
    $region22: #{tpu_custom_call.1} parent=1 // pred_check
      _
    $region23: #{tpu_custom_call.1} parent=1 // pred_check_branch
      %247 = sbr.rel (0) target = $region25
    $region24: #{tpu_custom_call.1} parent=1 // pred_region
      %s249 = ssub.s32 256, 256
      %250 = vsyncadd [#allocation7], %s249
      %s252 = sshll.u32 [#allocation6], 4
      %s253 = int_to_ptr.vmem [resolvable:$true] %s252
      %255 = dma.vmem_to_hbm [thread:$0]  %s253, 256, %s3, [#allocation7]
    $region25: #{tpu_custom_call.1} parent=1 // pred_fallthru
      _
    // Predicated region
    $region26: #{tpu_custom_call.1} parent=1 // pred_check
      _
    $region27: #{tpu_custom_call.1} parent=1 // pred_check_branch
      %257 = sbr.rel (0) target = $region29
    $region28: #{tpu_custom_call.1} parent=1 // pred_region
      %258 = dma.done [#allocation4], 256
    $region29: #{tpu_custom_call.1} parent=1 // pred_fallthru
      _
    // Predicated region
    $region30: #{tpu_custom_call.1} parent=1 // pred_check
      _
    $region31: #{tpu_custom_call.1} parent=1 // pred_check_branch
      %260 = sbr.rel (0) target = $region33
    $region32: #{tpu_custom_call.1} parent=1 // pred_region
      %261 = dma.done [#allocation7], 256
    $region33: #{tpu_custom_call.1} parent=1 // pred_fallthru
      _
    %262 = vsyncpa [#allocation3], 1
    %263 = vsyncpa [#allocation4], 1
    %264 = vsyncpa [#allocation7], 1

</llo_original>
